<compile_context>
chip_gen: v7x
topology: tpu7x:2x2x1
jax: 0.10.0
libtpu: 0.0.40
codegen_flags: <defaults>
</compile_context>

<pallas_src>
import math
from functools import partial

import jax
import jax.numpy as jnp
from jax.experimental import pallas as pl
from jax.experimental.pallas import tpu as pltpu


# ----------------------------- device helpers ------------------------------

def _device_kind():
    try:
        return jax.devices()[0].device_kind.lower()
    except Exception:
        return ""


def _is_v7x():
    return "v7" in _device_kind()


def _gate_dtype(x_dtype):
    # v5-generation chips have no bf16 VPU/EUP; gate in f32 there.
    if x_dtype == jnp.bfloat16 and "v5" not in _device_kind():
        return jnp.bfloat16
    return jnp.float32


# ----------------------------- tiling helpers ------------------------------

def _divisors_desc(n):
    ds = set()
    i = 1
    while i * i <= n:
        if n % i == 0:
            ds.add(i)
            ds.add(n // i)
        i += 1
    return sorted(ds, reverse=True)


def _pick_batch_fold(N, C, itemsize):
    """Number of batch samples folded into one row block (rows = nb*C).

    Targets ~128 rows (f32) / ~256 rows (bf16) so the sublanes and the MXU lhs
    are full, while keeping nb a divisor of N (no partial row blocks, so the
    block-diagonal weight always lines up) and nb*C sublane-aligned (or equal
    to the full N*C extent, which is always a legal block dim)."""
    sub = 16 if itemsize == 2 else 8
    target_rows = 256 if itemsize == 2 else 128
    target_nb = max(1, target_rows // max(C, 1))
    req = sub // math.gcd(C, sub)            # nb % req == 0  =>  (nb*C) % sub == 0
    divs = _divisors_desc(N)
    for d in divs:
        if d <= target_nb and d % req == 0:
            return d
    for d in divs:                            # allow bigger nb if weight stays small
        if d % req == 0 and d * C <= 2048:
            return d
    # TODO(synk): pathological (huge N, tiny odd C) falls back to the full batch
    # extent; fine for CRNN-sized GLUs.
    return N


def _pick_lane_tile(L, rows, itemsize, max_tile_bytes):
    """Largest lane tile (multiple of 128, or full L) keeping a single
    (rows, tl) buffer under max_tile_bytes."""
    cap = max(128, (max_tile_bytes // max(rows * itemsize, 1)) // 128 * 128)
    return int(L) if L <= cap else int(cap)


# --------------------------------- kernel ----------------------------------

def _glu_kernel(x_ref, w_ref, b_ref, o_ref, *, gate_dtype):
    """One lane-dense (rows, tl) tile of GLU.

    x_ref: (rows, tl)   rows = nb*C: nb folded samples, channels on sublanes
    w_ref: (rows, rows) block-diagonal kron(I_nb, W), grid-resident
    b_ref: (rows, 1)    per-row bias (f32), grid-resident
    o_ref: (rows, tl)
    """
    x = x_ref[...]
    # Channel contraction for all folded samples: a single MXU matmul with
    # f32 accumulation (zero blocks of the block-diagonal weight contribute 0).
    lin = jnp.dot(w_ref[...], x, preferred_element_type=jnp.float32) + b_ref[...]
    sig = jax.nn.sigmoid(x.astype(gate_dtype))               # EUP
    o_ref[...] = (lin.astype(gate_dtype) * sig).astype(o_ref.dtype)


# -------------------------------- wrapper -----------------------------------

def glu_pallas(x_nchw, weight, bias):
    """x_nchw: (N, C, H, W); weight: (C, C) torch (out, in); bias: (C,)."""
    N, C, H, W = x_nchw.shape
    L = H * W
    itemsize = x_nchw.dtype.itemsize

    nb = _pick_batch_fold(N, C, itemsize)
    rows = nb * C
    rows_total = N * C

    max_tile_bytes = (6 << 20) if _is_v7x() else (4 << 20)
    tl = _pick_lane_tile(L, rows, itemsize, max_tile_bytes)

    g_rows = pl.cdiv(rows_total, rows)
    g_lanes = pl.cdiv(L, tl)
    # v7x has 2 TensorCores: guarantee >=2 steps along a "parallel" axis when
    # the whole problem would otherwise be one grid step (keep tiles unmasked).
    if g_rows * g_lanes == 1 and L >= 256 and L % 256 == 0:
        tl = L // 2
        g_lanes = 2

    x_rows = x_nchw.reshape(rows_total, L)            # free reshape (row-major)
    # Block-diagonal weight: lin[b*C + o, :] = sum_c W[o, c] * x[b*C + c, :]
    wbd = jnp.kron(jnp.eye(nb, dtype=weight.dtype), weight).astype(x_nchw.dtype)
    b_col = jnp.tile(bias.astype(jnp.float32), nb).reshape(rows, 1)

    # Scoped-VMEM budget: double-buffered in/out activation tiles plus the
    # (double-buffered) resident weight/bias, 2x headroom, capped at 48 MiB so
    # v7x (64 MiB physical) keeps room for Mosaic internal scratch.
    tile_bytes = rows * tl * itemsize
    wb_bytes = rows * rows * wbd.dtype.itemsize + rows * 4
    vmem_est = 4 * tile_bytes + 2 * wb_bytes
    vmem_limit = int(min(max(2 * vmem_est, 32 << 20), 48 << 20))

    kernel = partial(_glu_kernel, gate_dtype=_gate_dtype(x_nchw.dtype))

    out_rows = pl.pallas_call(
        kernel,
        out_shape=jax.ShapeDtypeStruct((rows_total, L), x_nchw.dtype),
        grid_spec=pltpu.PrefetchScalarGridSpec(
            num_scalar_prefetch=0,
            grid=(g_rows, g_lanes),
            in_specs=[
                pl.BlockSpec((rows, tl), lambda i, j: (i, j)),
                pl.BlockSpec((rows, rows), lambda i, j: (0, 0)),  # resident weight
                pl.BlockSpec((rows, 1), lambda i, j: (0, 0)),     # resident bias
            ],
            out_specs=pl.BlockSpec((rows, tl), lambda i, j: (i, j)),
        ),
        compiler_params=pltpu.CompilerParams(
            dimension_semantics=("parallel", "parallel"),
            vmem_limit_bytes=vmem_limit),
    )(x_rows, wbd, b_col)

    return out_rows.reshape(N, C, H, W)               # free reshape back to NCHW


# ------------------------------- reference ----------------------------------

def glu_reference(x_nchw, weight, bias):
    """Pure-JAX reference replicating the PyTorch forward (f32, HIGHEST dot)."""
    xf = x_nchw.astype(jnp.float32)
    wf = weight.astype(jnp.float32)
    bf = bias.astype(jnp.float32)
    lin = jnp.einsum("nchw,oc->nohw", xf, wf,
                     precision=jax.lax.Precision.HIGHEST) + bf[None, :, None, None]
    return lin * jax.nn.sigmoid(xf)


def _quantized_inputs(key, N, C, H, W, dtype):
    """Deterministic test data whose every operand is exactly representable in
    bf16 (integer activations, weights/bias on a 1/64 grid), so the check does
    not depend on which precision mode the MXU uses for the contraction."""
    kx, kw, kb = jax.random.split(key, 3)
    x = jax.random.randint(kx, (N, C, H, W), -3, 4).astype(dtype)
    bound = 1.0 / math.sqrt(C)     # nn.Linear-style U(-1/sqrt(C), 1/sqrt(C))
    w = jnp.round(jax.random.uniform(kw, (C, C), minval=-bound, maxval=bound) * 64.0) / 64.0
    b = jnp.round(jax.random.uniform(kb, (C,), minval=-bound, maxval=bound) * 64.0) / 64.0
    return x, w.astype(dtype), b.astype(dtype)


if __name__ == "__main__":
    key = jax.random.PRNGKey(0)
    configs = [
        # (shape, dtype, tol): covers small-C batch folding with 2 lane tiles,
        # C % 8 == 0 with odd spatial extent, and the bf16 storage/gate path.
        ((2, 4, 16, 16), jnp.float32, 1e-4),
        ((3, 16, 5, 7), jnp.float32, 1e-4),
        ((2, 4, 16, 16), jnp.bfloat16, 5e-2),   # tol dominated by bf16 output rounding
    ]
    for idx, (shape, dtype, tol) in enumerate(configs):
        key, sub = jax.random.split(key)
        N, C, H, W = shape
        x, w, b = _quantized_inputs(sub, N, C, H, W, dtype)
        out = jax.block_until_ready(glu_pallas(x, w, b))
        ref = glu_reference(x, w, b)
        assert out.shape == (N, C, H, W)
        assert jnp.allclose(out.astype(jnp.float32), ref, atol=tol, rtol=tol), \
            f"mismatch vs reference for config {idx} {shape} {dtype}"
    print("KERNEL_OK")
</pallas_src>

<mosaic_0001>
module attributes {stable_mosaic.version = 11 : i64} {
  func.func @_glu_kernel(%arg0: i32, %arg1: i32, %arg2: memref<8x128xf32, #tpu.memory_space<vmem>>, %arg3: memref<8x8xf32, #tpu.memory_space<vmem>>, %arg4: memref<8x1xf32, #tpu.memory_space<vmem>>, %arg5: memref<8x128xf32, #tpu.memory_space<vmem>>) attributes {dimension_semantics = [#tpu.dimension_semantics<parallel>, #tpu.dimension_semantics<parallel>], iteration_bounds = array<i64: 1, 2>, scalar_prefetch = 0 : i64, scratch_operands = 0 : i64, tpu.core_type = #tpu.core_type<tc>, window_params = [{transform_indices = @transform_0, window_bounds = array<i64: 8, 128>}, {pipeline_mode = #tpu.pipeline_mode<synchronous>, transform_indices = @transform_1, window_bounds = array<i64: 8, 8>}, {pipeline_mode = #tpu.pipeline_mode<synchronous>, transform_indices = @transform_2, window_bounds = array<i64: 8, 1>}, {transform_indices = @transform_3, window_bounds = array<i64: 8, 128>}]} {
    %c0 = arith.constant 0 : index
    %c0_0 = arith.constant 0 : index
    %0 = vector.load %arg2[%c0, %c0_0] : memref<8x128xf32, #tpu.memory_space<vmem>>, vector<8x128xf32>
    %c0_1 = arith.constant 0 : index
    %c0_2 = arith.constant 0 : index
    %1 = vector.load %arg3[%c0_1, %c0_2] : memref<8x8xf32, #tpu.memory_space<vmem>>, vector<8x8xf32>
    %cst = arith.constant dense<0.000000e+00> : vector<8x128xf32>
    %2 = tpu.matmul %1, %0, %cst {dimension_numbers = #tpu.dot_dimension_numbers<[1], [0], [0], [1], [0, 0, 1, 1], [], []>} : vector<8x8xf32>, vector<8x128xf32>, vector<8x128xf32> -> vector<8x128xf32>
    %c0_3 = arith.constant 0 : index
    %c0_4 = arith.constant 0 : index
    %3 = vector.load %arg4[%c0_3, %c0_4] : memref<8x1xf32, #tpu.memory_space<vmem>>, vector<8x1xf32>
    %4 = vector.broadcast %3 : vector<8x1xf32> to vector<8x128xf32>
    %5 = arith.addf %2, %4 : vector<8x128xf32>
    %6 = arith.negf %0 : vector<8x128xf32>
    %7 = math.exp %6 : vector<8x128xf32>
    %cst_5 = arith.constant 1.000000e+00 : f32
    %8 = vector.broadcast %cst_5 : f32 to vector<8x128xf32>
    %9 = arith.addf %8, %7 : vector<8x128xf32>
    %10 = arith.divf %8, %9 : vector<8x128xf32>
    %11 = arith.mulf %5, %10 : vector<8x128xf32>
    %c0_6 = arith.constant 0 : index
    %c0_7 = arith.constant 0 : index
    %12 = vector.load %arg5[%c0_6, %c0_7] : memref<8x128xf32, #tpu.memory_space<vmem>>, vector<8x128xf32>
    tpu.vector_store %arg5[%c0_6, %c0_7], %11 {strides = array<i32>} : memref<8x128xf32, #tpu.memory_space<vmem>>, vector<8x128xf32>,
    return
  }
  func.func @transform_0(%arg0: i32, %arg1: i32) -> (i32, i32) {
    %c0_i32 = arith.constant 0 : i32
    return %arg0, %arg1 : i32, i32
  }
  func.func @transform_1(%arg0: i32, %arg1: i32) -> (i32, i32) {
    %c0_i32 = arith.constant 0 : i32
    %c0_i32_0 = arith.constant 0 : i32
    %c0_i32_1 = arith.constant 0 : i32
    return %c0_i32, %c0_i32_0 : i32, i32
  }
  func.func @transform_2(%arg0: i32, %arg1: i32) -> (i32, i32) {
    %c0_i32 = arith.constant 0 : i32
    %c0_i32_0 = arith.constant 0 : i32
    %c0_i32_1 = arith.constant 0 : i32
    return %c0_i32, %c0_i32_0 : i32, i32
  }
  func.func @transform_3(%arg0: i32, %arg1: i32) -> (i32, i32) {
    %c0_i32 = arith.constant 0 : i32
    return %arg0, %arg1 : i32, i32
  }
}

</mosaic_0001>

<llo_original>
// kernel: tpu_custom_call.1
$region0: #{tpu_custom_call.1}
  #allocation0 [shape = 'u32[]', space=smem, size = 0x4, offset = 0x4, fixed_abs, tag = 'smem constant byte address 0x4 - core index']
  #allocation1 [shape = 'u32[144,128]{1,0:T(1,128)}', space=vmem, size = 0x12000, scoped, tag = 'internal scratch']
  %s0 = inlined_call_operand.hbm [shape: f32[8,256], index: 0, kind: input, shape index: {}]
  %s1 = inlined_call_operand.vmem [shape: f32[8,8], index: 1, kind: input, shape index: {}]
  %s2 = inlined_call_operand.vmem [shape: f32[8,1], index: 2, kind: input, shape index: {}]
  %s3 = inlined_call_operand.hbm [shape: f32[8,256], index: 3, kind: output, shape index: {}]
  %s4 = sld [smem:[#allocation0]]
  $region49: #{tpu_custom_call.1} parent=0
    _
  %s6 = ssub.s32 1, %s4
  %s7 = scalar_select 0, %s6, %s4
  $region1: #{tpu_custom_call.1} parent=0
    #allocation2 [shape = 'u8[8192]{0}', space=vmem, size = 0x2000, scoped, tag = 'input window, operand 0']
    #allocation3 [shape = 's32[2]{0}', space=sflag, size = 0x8, scoped, tag = 'scoped memory for tpu_custom_call.1']
    #allocation4 [shape = 's32[2]{0}', space=sflag, size = 0x8, scoped, tag = 'scoped memory for tpu_custom_call.1']
    #allocation5 [shape = 'u8[8192]{0}', space=vmem, size = 0x2000, scoped, tag = 'output window, operand 0']
    %8 = vsyncpa [#allocation3], 0
    %s9 = scalar_lea.sflag [#allocation3], 1
    %10 = vsyncpa %s9, 0
    %11 = vsyncpa [#allocation4], 0
    %s12 = scalar_lea.sflag [#allocation4], 1
    %13 = vsyncpa %s12, 0
    loop: start=0, step=1, limit=4
    $region2: #{tpu_custom_call.1} parent=1 // loop_pre_header
      _
    $region3: #{tpu_custom_call.1} parent=1 // loop_header
      %s15 = sphi 0, %s19
      %p16 = scmp.ge.s32.totalorder %s15, 4
      %s22 = sphi 0, %s34
      %s23 = sphi 0, %s30
      %s24 = sphi 0, %s22
      %s25 = sphi 0, %s23
      %s26 = sphi 0, %s24
      %s27 = sphi 0, %s25
      %s39 = sphi 0, %s41
      %s42 = sphi 0, %s39
      %s43 = sphi 0, %s42
      %s59 = sphi 0, %s43
      %s63 = sphi 0, %s63
      %s65 = sphi 0, %s63
      %s66 = sphi 0, %s65
      %s80 = sphi 0, %s66
      %s84 = sphi 0, %s84
      %s86 = sphi 0, %s84
      %s87 = sphi 0, %s86
      %s101 = sphi 0, %s87
      %s109 = sphi 0, %s111
      %s112 = sphi 0, %s109
      %s113 = sphi 0, %s112
      %s129 = sphi 0, %s113
    $region4: #{tpu_custom_call.1} parent=1 // loop_header_branch
      %18 = sbr.rel (%p16) target = $region8
    $region5: #{tpu_custom_call.1} parent=1 // loop_body
      %s20 = ssub.s32 %s15, 1
      %s21 = ssub.s32 %s15, 2
      %s28 = sadd.s32 1, %s23
      %p29 = scmp.ge.s32.totalorder %s28, 2
      %s30 = scalar_select %p29, 0, %s28
      %s31 = sadd.s32 1, %s22
      %s32 = scalar_select %p29, %s31, %s22
      %p33 = scmp.ge.s32.totalorder %s32, 1
      %s34 = scalar_select %p33, 0, %s32
      %s35 = ssub.s32 %s22, %s34
      %s36 = ssub.s32 %s23, %s30
      %s37 = sor.u32 %s35, %s36
      %p38 = scmp.eq.s32.totalorder %s37, 0
      %s40 = sadd.s32 %s39, 1
      %s41 = scalar_select %p38, %s39, %s40
      %p44 = pneg %p38
      %p45 = scmp.eq.s32.totalorder %s15, 1
      %p46 = por %p44, %p45
      %p47 = scmp.ne.s32.totalorder %s39, %s42
      %p48 = scmp.eq.s32.totalorder %s15, 0
      %p49 = por %p47, %p48
      %p50 = scmp.ne.s32.totalorder %s39, %s42
      %p51 = scmp.eq.s32.totalorder %s20, 1
      %p52 = por %p50, %p51
      %p53 = scmp.ne.s32.totalorder %s42, %s43
      %p54 = scmp.eq.s32.totalorder %s20, 0
      %p55 = por %p53, %p54
      %p56 = scmp.ne.s32.totalorder %s42, %s43
      %p57 = scmp.eq.s32.totalorder %s21, 1
      %p58 = por %p56, %p57
      %p60 = scmp.ne.s32.totalorder %s43, %s59
      %p61 = scmp.eq.s32.totalorder %s21, 0
      %p62 = por %p60, %p61
      %s64 = sadd.s32 %s63, 1
      %p67 = scmp.eq.s32.totalorder %s15, 1
      %p68 = scmp.ne.s32.totalorder %s63, %s65
      %p69 = scmp.eq.s32.totalorder %s15, 0
      %p70 = por %p68, %p69
      %p71 = scmp.ne.s32.totalorder %s63, %s65
      %p72 = scmp.eq.s32.totalorder %s20, 1
      %p73 = por %p71, %p72
      %p74 = scmp.ne.s32.totalorder %s65, %s66
      %p75 = scmp.eq.s32.totalorder %s20, 0
      %p76 = por %p74, %p75
      %p77 = scmp.ne.s32.totalorder %s65, %s66
      %p78 = scmp.eq.s32.totalorder %s21, 1
      %p79 = por %p77, %p78
      %p81 = scmp.ne.s32.totalorder %s66, %s80
      %p82 = scmp.eq.s32.totalorder %s21, 0
      %p83 = por %p81, %p82
      %s85 = sadd.s32 %s84, 1
      %p88 = scmp.eq.s32.totalorder %s15, 1
      %p89 = scmp.ne.s32.totalorder %s84, %s86
      %p90 = scmp.eq.s32.totalorder %s15, 0
      %p91 = por %p89, %p90
      %p92 = scmp.ne.s32.totalorder %s84, %s86
      %p93 = scmp.eq.s32.totalorder %s20, 1
      %p94 = por %p92, %p93
      %p95 = scmp.ne.s32.totalorder %s86, %s87
      %p96 = scmp.eq.s32.totalorder %s20, 0
      %p97 = por %p95, %p96
      %p98 = scmp.ne.s32.totalorder %s86, %s87
      %p99 = scmp.eq.s32.totalorder %s21, 1
      %p100 = por %p98, %p99
      %p102 = scmp.ne.s32.totalorder %s87, %s101
      %p103 = scmp.eq.s32.totalorder %s21, 0
      %p104 = por %p102, %p103
      %s105 = ssub.s32 %s22, %s34
      %s106 = ssub.s32 %s23, %s30
      %s107 = sor.u32 %s105, %s106
      %p108 = scmp.eq.s32.totalorder %s107, 0
      %s110 = sadd.s32 %s109, 1
      %s111 = scalar_select %p108, %s109, %s110
      %p114 = pneg %p108
      %p115 = scmp.eq.s32.totalorder %s15, 1
      %p116 = por %p114, %p115
      %p117 = scmp.ne.s32.totalorder %s109, %s112
      %p118 = scmp.eq.s32.totalorder %s15, 0
      %p119 = por %p117, %p118
      %p120 = scmp.ne.s32.totalorder %s109, %s112
      %p121 = scmp.eq.s32.totalorder %s20, 1
      %p122 = por %p120, %p121
      %p123 = scmp.ne.s32.totalorder %s112, %s113
      %p124 = scmp.eq.s32.totalorder %s20, 0
      %p125 = por %p123, %p124
      %p126 = scmp.ne.s32.totalorder %s112, %s113
      %p127 = scmp.eq.s32.totalorder %s21, 1
      %p128 = por %p126, %p127
      %p130 = scmp.ne.s32.totalorder %s113, %s129
      %p131 = scmp.eq.s32.totalorder %s21, 0
      %p132 = por %p130, %p131
      %p133 = scmp.le.s32.totalorder 1, %s15
      %p134 = scmp.lt.s32.totalorder %s15, 3
      %p135 = pnand %p133, %p134
      %p136 = pneg %p135
      // Predicated region
      $region9: #{tpu_custom_call.1} parent=5 // pred_check
        _
      $region10: #{tpu_custom_call.1} parent=5 // pred_check_branch
        %138 = sbr.rel (%p135) target = $region12
      $region11: #{tpu_custom_call.1} parent=5 // pred_region
        %s139 = ssub.s32 %s15, 1
        // Predicated region
        $region13: #{tpu_custom_call.1} parent=11 // pred_check
          %p140 = pneg %p76
        $region14: #{tpu_custom_call.1} parent=11 // pred_check_branch
          %142 = sbr.rel (%p140) target = $region16
        $region15: #{tpu_custom_call.1} parent=11 // pred_region
          _
        $region16: #{tpu_custom_call.1} parent=11 // pred_fallthru
          _
        // Predicated region
        $region17: #{tpu_custom_call.1} parent=11 // pred_check
          %p143 = pneg %p97
        $region18: #{tpu_custom_call.1} parent=11 // pred_check_branch
          %145 = sbr.rel (%p143) target = $region20
        $region19: #{tpu_custom_call.1} parent=11 // pred_region
          _
        $region20: #{tpu_custom_call.1} parent=11 // pred_fallthru
          _
      $region12: #{tpu_custom_call.1} parent=5 // pred_fallthru
        _
      %p146 = scmp.lt.s32.totalorder %s15, 2
      // Predicated region
      $region21: #{tpu_custom_call.1} parent=5 // pred_check
        %p147 = pneg %p146
      $region22: #{tpu_custom_call.1} parent=5 // pred_check_branch
        %149 = sbr.rel (%p147) target = $region24
      $region23: #{tpu_custom_call.1} parent=5 // pred_region
        // Predicated region
        $region25: #{tpu_custom_call.1} parent=23 // pred_check
          %p150 = pneg %p49
        $region26: #{tpu_custom_call.1} parent=23 // pred_check_branch
          %152 = sbr.rel (%p150) target = $region28
        $region27: #{tpu_custom_call.1} parent=23 // pred_region
          %s153 = sand.u32 %s39, 1
          %s154 = scalar_lea.sflag [#allocation3], %s153
          %s155 = sand.u32 %s39, 1
          %s156 = smul.addr %s155, 8
          %s157 = scalar_lea.vmem [#allocation2], %s156
          %s159 = ssub.s32 128, 128
          %160 = vsyncadd %s154, %s159
          %s161 = smul.addr %s22, 2
          %s162 = sadd.s32 %s23, %s161
          %s163 = smul.addr %s162, 128
          %s164 = scalar_lea.hbm %s0, %s163
          %s166 = sshll.u32 %s157, 4
          %s167 = int_to_ptr.vmem [resolvable:$true] %s166
          %169 = dma.hbm_to_vmem [thread:$0]  %s164, 128, %s167, %s154
        $region28: #{tpu_custom_call.1} parent=23 // pred_fallthru
          _
      $region24: #{tpu_custom_call.1} parent=5 // pred_fallthru
        _
      %p170 = scmp.le.s32.totalorder 1, %s15
      %p171 = scmp.lt.s32.totalorder %s15, 3
      %p172 = pnand %p170, %p171
      %p173 = pneg %p172
      // Predicated region
      $region29: #{tpu_custom_call.1} parent=5 // pred_check
        _
      $region30: #{tpu_custom_call.1} parent=5 // pred_check_branch
        %175 = sbr.rel (%p172) target = $region32
      $region31: #{tpu_custom_call.1} parent=5 // pred_region
        %s176 = ssub.s32 %s15, 1
        %s177 = sand.u32 %s42, 1
        %s178 = scalar_lea.sflag [#allocation3], %s177
        %s179 = sand.u32 %s42, 1
        %s180 = smul.addr %s179, 8
        %s181 = scalar_lea.vmem [#allocation2], %s180
        // Predicated region
        $region33: #{tpu_custom_call.1} parent=31 // pred_check
          %p182 = pneg %p55
        $region34: #{tpu_custom_call.1} parent=31 // pred_check_branch
          %184 = sbr.rel (%p182) target = $region36
        $region35: #{tpu_custom_call.1} parent=31 // pred_region
          %185 = dma.done %s178, 128
        $region36: #{tpu_custom_call.1} parent=31 // pred_fallthru
          _
        %s186 = sand.u32 %s42, 1
        %s187 = scalar_lea.sflag [#allocation3], %s186
        %s188 = sand.u32 %s42, 1
        %s189 = smul.addr %s188, 8
        %s190 = scalar_lea.vmem [#allocation2], %s189
        %p191 = pneg %p55
        %p192 = pneg %p52
        %p193 = pneg %p76
        %p194 = pneg %p73
        %p195 = pneg %p97
        %p196 = pneg %p94
        %p197 = pneg %p125
        %p198 = pneg %p122
        %s199 = sand.u32 %s112, 1
        %s200 = scalar_lea.sflag [#allocation4], %s199
        %s201 = sand.u32 %s112, 1
        %s202 = smul.addr %s201, 8
        %s203 = scalar_lea.vmem [#allocation5], %s202
        %v204 = vld [vmem:[%s181] sm:$0xff]
        %v205 = vld [vmem:[%s1] sm:$0xff]
        %v206 = vld [vmem:[%s2] sm:$0xff]
        %208 = vset.pattern.permute.xlu0 0
        %209 = vperm.xlu0 %208, %v206
        %v210 = vpop.permute.xlu0 %209
        %vm212 = vcmask 64512
        %v214 = vsel %vm212, %v205, 0
        %216 = vmatprep.subr.mxu0 0.0
        %217 = vmatpush1.msra.mxu0 %v204
        %218 = vmatprep.subr.mxu0 0.0
        %219 = vmatpush1.msra.mxu0 0.0
        %220 = vmatprep.subr.mxu0 0.0
        %221 = vmatpush1.msra.mxu0 0.0
        %222 = vmatprep.subr.mxu0 0.0
        %223 = vmatpush1.msra.mxu0 0.0
        %224 = vmatprep.subr.mxu0 0.0
        %225 = vmatpush1.msra.mxu0 0.0
        %226 = vmatprep.subr.mxu0 0.0
        %227 = vmatpush1.msra.mxu0 0.0
        %228 = vmatprep.subr.mxu0 0.0
        %229 = vmatpush1.msra.mxu0 0.0
        %230 = vmatprep.subr.mxu0 0.0
        %231 = vmatpush1.msra.mxu0 0.0
        %232 = vmatprep.subr.mxu0 0.0
        %233 = vmatpush1.msra.mxu0 0.0
        %234 = vmatprep.subr.mxu0 0.0
        %235 = vmatpush1.msra.mxu0 0.0
        %236 = vmatprep.subr.mxu0 0.0
        %237 = vmatpush1.msra.mxu0 0.0
        %238 = vmatprep.subr.mxu0 0.0
        %239 = vmatpush1.msra.mxu0 0.0
        %240 = vmatprep.subr.mxu0 0.0
        %241 = vmatpush1.msra.mxu0 0.0
        %242 = vmatprep.subr.mxu0 0.0
        %243 = vmatpush1.msra.mxu0 0.0
        %244 = vmatprep.subr.mxu0 0.0
        %245 = vmatpush1.msra.mxu0 0.0
        %246 = vmatprep.subr.mxu0 0.0
        %247 = vmatpush1.msra.mxu0 0.0
        %248 = vmatprep.subr.mxu0 0.0
        %249 = vmatpush1.msra.mxu0 0.0
        %250 = vmatprep.subr.mxu0 0.0
        %251 = vmatpush1.msra.mxu0 0.0
        %252 = vmatprep.subr.mxu0 0.0
        %253 = vmatpush1.msra.mxu0 0.0
        %254 = vmatprep.subr.mxu0 0.0
        %255 = vmatpush1.msra.mxu0 0.0
        %256 = vmatprep.subr.mxu0 0.0
        %257 = vmatpush1.msra.mxu0 0.0
        %258 = vmatprep.subr.mxu0 0.0
        %259 = vmatpush1.msra.mxu0 0.0
        %260 = vmatprep.subr.mxu0 0.0
        %261 = vmatpush1.msra.mxu0 0.0
        %262 = vmatprep.subr.mxu0 0.0
        %263 = vmatpush1.msra.mxu0 0.0
        %264 = vmatprep.subr.mxu0 0.0
        %265 = vmatpush1.msra.mxu0 0.0
        %266 = vmatprep.subr.mxu0 0.0
        %267 = vmatpush1.msra.mxu0 0.0
        %268 = vmatprep.subr.mxu0 0.0
        %269 = vmatpush1.msra.mxu0 0.0
        %270 = vmatprep.subr.mxu0 0.0
        %271 = vmatpush1.msra.mxu0 0.0
        %272 = vmatprep.subr.mxu0 0.0
        %273 = vmatpush1.msra.mxu0 0.0
        %274 = vmatprep.subr.mxu0 0.0
        %275 = vmatpush1.msra.mxu0 0.0
        %276 = vmatprep.subr.mxu0 0.0
        %277 = vmatpush1.msra.mxu0 0.0
        %278 = vmatprep.subr.mxu0 0.0
        %279 = vmatpush1.msra.mxu0 0.0
        %280 = vmatprep.mubr.f32.mxu0 0.0
        %281 = vmatmul.mubr.f32.gmra.mrb[0].mxu0 %v214
        %v282 = vpop.f32.mrb[0].mxu0
        %v283 = vadd.f32 %v210, %v282
        %v284 = vpop.f32.mrb[0].mxu0
        %285 = vdwg.mxu0
        %v286 = vxor.u32 %v204, 2147483648
        %v287 = vmul.f32 %v286, 1.442695
        %v288 = vpow.pop %v287
        %v289 = vadd.f32 %v288, 1.0
        %v290 = vrcp.pop %v289
        %v291 = vmul.f32 1.0, %v290
        %v292 = vmul.f32 %v283, %v291
        %293 = vst [vmem:[%s203] sm:$0xff] %v292
        %s294 = sand.u32 %s112, 1
        %s295 = scalar_lea.sflag [#allocation4], %s294
        %s296 = sand.u32 %s112, 1
        %s297 = smul.addr %s296, 8
        %s298 = scalar_lea.vmem [#allocation5], %s297
        // Predicated region
        $region37: #{tpu_custom_call.1} parent=31 // pred_check
          %p299 = pneg %p122
        $region38: #{tpu_custom_call.1} parent=31 // pred_check_branch
          %301 = sbr.rel (%p299) target = $region40
        $region39: #{tpu_custom_call.1} parent=31 // pred_region
          %s303 = ssub.s32 128, 128
          %304 = vsyncadd %s295, %s303
          %s305 = smul.addr %s24, 2
          %s306 = sadd.s32 %s25, %s305
          %s307 = smul.addr %s306, 128
          %s308 = scalar_lea.hbm %s3, %s307
          %s310 = sshll.u32 %s298, 4
          %s311 = int_to_ptr.vmem [resolvable:$true] %s310
          %313 = dma.vmem_to_hbm [thread:$0]  %s311, 128, %s308, %s295
        $region40: #{tpu_custom_call.1} parent=31 // pred_fallthru
          _
      $region32: #{tpu_custom_call.1} parent=5 // pred_fallthru
        _
      %p314 = scmp.le.s32.totalorder 2, %s15
      // Predicated region
      $region41: #{tpu_custom_call.1} parent=5 // pred_check
        %p315 = pneg %p314
      $region42: #{tpu_custom_call.1} parent=5 // pred_check_branch
        %317 = sbr.rel (%p315) target = $region44
      $region43: #{tpu_custom_call.1} parent=5 // pred_region
        %s318 = ssub.s32 %s15, 2
        // Predicated region
        $region45: #{tpu_custom_call.1} parent=43 // pred_check
          %p319 = pneg %p128
        $region46: #{tpu_custom_call.1} parent=43 // pred_check_branch
          %321 = sbr.rel (%p319) target = $region48
        $region47: #{tpu_custom_call.1} parent=43 // pred_region
          %s322 = sand.u32 %s113, 1
          %s323 = scalar_lea.sflag [#allocation4], %s322
          %s324 = sand.u32 %s113, 1
          %s325 = smul.addr %s324, 8
          %s326 = scalar_lea.vmem [#allocation5], %s325
          %327 = dma.done %s323, 128
        $region48: #{tpu_custom_call.1} parent=43 // pred_fallthru
          _
      $region44: #{tpu_custom_call.1} parent=5 // pred_fallthru
        _
    $region6: #{tpu_custom_call.1} parent=1 // loop_footer
      %s19 = sadd.s32 1, %s15
    $region7: #{tpu_custom_call.1} parent=1 // loop_footer_branch
      %14 = sbr.rel target = $region3
    $region8: #{tpu_custom_call.1} parent=1 // loop_exit
      _
    %328 = vsyncpa [#allocation3], 1
    %s329 = scalar_lea.sflag [#allocation3], 1
    %330 = vsyncpa %s329, 1
    %331 = vsyncpa [#allocation4], 1
    %s332 = scalar_lea.sflag [#allocation4], 1
    %333 = vsyncpa %s332, 1

</llo_original>
